<compile_context>
chip_gen: v7x
topology: tpu7x:2x2x1
jax: 0.10.0
libtpu: 0.0.40
codegen_flags: <defaults>
</compile_context>

<pallas_src>
import functools
import math

import jax
import jax.numpy as jnp
from jax import lax
from jax.experimental import pallas as pl
from jax.experimental.pallas import tpu as pltpu


# ---------------------------------------------------------------------------
# Parameter / buffer construction (init-time glue, plain JAX)
# ---------------------------------------------------------------------------
def make_positional_encoding(d_model: int, max_len: int = 5000,
                             dtype=jnp.float32) -> jnp.ndarray:
    """Builds the `pe` buffer exactly as the PyTorch __init__ does."""
    position = jnp.arange(max_len, dtype=jnp.float32)[:, None]          # [max_len, 1]
    div_term = jnp.exp(
        jnp.arange(0, d_model, 2, dtype=jnp.float32)
        * (-math.log(10000.0) / d_model)
    )                                                                    # [d_model/2]
    pe = jnp.zeros((max_len, 1, d_model), dtype=jnp.float32)
    pe = pe.at[:, 0, 0::2].set(jnp.sin(position * div_term))
    pe = pe.at[:, 0, 1::2].set(jnp.cos(position * div_term))
    return pe.astype(dtype)                                              # [max_len, 1, d_model]


# ---------------------------------------------------------------------------
# In-kernel helpers
# ---------------------------------------------------------------------------
def _hash_u32(x):
    """splitmix32-style finalizer: uint32 -> well-mixed uint32 (VPU int ops)."""
    x = x ^ (x >> 16)
    x = x * jnp.uint32(0x7FEB352D)
    x = x ^ (x >> 15)
    x = x * jnp.uint32(0x846CA68B)
    x = x ^ (x >> 16)
    return x


def _replicate_pe(pe_tile, rep):
    # Replicate pe across the folded batch axis in-kernel (VPU/XLU filler that
    # hides under DMA) instead of materializing the broadcast in HBM.
    return pe_tile if rep == 1 else jnp.tile(pe_tile, (1, rep))


# ---------------------------------------------------------------------------
# Pallas kernels (hot path: broadcast add, optional dropout)
# ---------------------------------------------------------------------------
def _pe_add_kernel(x_ref, pe_ref, o_ref, *, rep):
    o_ref[...] = (x_ref[...] + _replicate_pe(pe_ref[...], rep)).astype(o_ref.dtype)


def _pe_add_dropout_kernel(seed_ref, x_ref, pe_ref, o_ref, *, rep, threshold, scale):
    # Inverted dropout with a counter-based hash PRNG:
    #   keep with prob (1-p):  hash(global_index ^ seed_mix) >= uint32(p * 2^32)
    # Unique global element index per tile => masks are i.i.d. across grid
    # steps; seed is mixed via a large odd constant so adjacent base seeds do
    # not produce correlated streams.
    # TODO(synk): will not bit-match torch's RNG stream.
    y = x_ref[...] + _replicate_pe(pe_ref[...], rep)
    shape = y.shape
    ts = shape[0]
    inner = 1
    for s in shape[1:]:
        inner *= s

    row = lax.broadcasted_iota(jnp.int32, shape, 0).astype(jnp.uint32)
    g_row = row + (pl.program_id(0) * ts).astype(jnp.uint32)
    flat = g_row * jnp.uint32(inner)
    mult = inner
    for ax in range(1, len(shape)):
        mult //= shape[ax]
        flat = flat + (lax.broadcasted_iota(jnp.int32, shape, ax)
                       .astype(jnp.uint32) * jnp.uint32(mult))

    seed_mix = seed_ref[0].astype(jnp.uint32) * jnp.uint32(0x9E3779B1)
    bits = _hash_u32(flat ^ seed_mix)
    keep = bits >= jnp.uint32(threshold)
    o_ref[...] = jnp.where(keep, y * scale, jnp.zeros_like(y)).astype(o_ref.dtype)


# ---------------------------------------------------------------------------
# Tiling helpers
# ---------------------------------------------------------------------------
def _choose_tile_seq(S: int, x_row_bytes: int, pe_row_bytes: int,
                     budget_bytes: int = 24 << 20) -> int:
    """Pick a seq-tile so the full double-buffered working set
    (x tile + out tile + pe tile, x2 buffering) stays within `budget_bytes`
    (~24 MiB; comfortably under the 48 MiB vmem limit we request, and under
    v7x's 64 MiB physical VMEM)."""
    per_row = 2 * (2 * x_row_bytes + pe_row_bytes)
    ts = max(1, budget_bytes // max(1, per_row))
    if ts < S:
        ts = max(8, (ts // 8) * 8)   # sublane-friendly when actually tiling
    return int(min(ts, S))


# ---------------------------------------------------------------------------
# Wrapper
# ---------------------------------------------------------------------------
def positional_encoding_forward(
    x: jnp.ndarray,
    pe: jnp.ndarray,
    *,
    dropout_p: float = 0.1,
    training: bool = False,
    seed: int = 0,
) -> jnp.ndarray:
    """
    x  : [seq_len, batch, d_model]
    pe : [max_len, 1, d_model]
    """
    S, B, D = x.shape
    dtype = x.dtype
    itemsize = jnp.dtype(dtype).itemsize

    pe_slice = pe[:S]                       # [S, 1, D]  (slice is glue; add is in-kernel)
    if pe_slice.dtype != dtype:
        pe_slice = pe_slice.astype(dtype)   # only if the buffer wasn't stored in model dtype

    # Lane-density: fold batch into the lane axis whenever B*D is a multiple of
    # the 128-lane width and either D itself is not lane-aligned or the batch
    # is too small to fill the 8 sublanes.  pe stays (S, D) and is replicated
    # in-kernel -> no extra HBM traffic.
    flatten = ((B * D) % 128 == 0) and ((D % 128 != 0) or (B < 8))
    if flatten:
        x_in = x.reshape(S, B * D)
        pe_in = pe_slice.reshape(S, D)
        rep = B
        block_ndim = 2
        x_block = lambda ts: (ts, B * D)
        pe_block = lambda ts: (ts, D)
        out_struct = jax.ShapeDtypeStruct((S, B * D), dtype)
    else:
        x_in = x
        pe_in = pe_slice
        rep = 1
        block_ndim = 3
        x_block = lambda ts: (ts, B, D)
        pe_block = lambda ts: (ts, 1, D)
        out_struct = jax.ShapeDtypeStruct((S, B, D), dtype)
        # TODO(synk): when neither D nor B*D is a multiple of 128 (tiny demo
        # shapes), stores are masked partial-lane stores; correct but not dense.

    x_row_bytes = B * D * itemsize
    pe_row_bytes = D * itemsize
    ts = _choose_tile_seq(S, x_row_bytes, pe_row_bytes)
    grid = (pl.cdiv(S, ts),)

    def idx(i, *_):  # trailing args absorb scalar-prefetch refs in training path
        return (i,) + (0,) * (block_ndim - 1)

    compiler_params = pltpu.CompilerParams(
        dimension_semantics=("parallel",),       # shard seq grid across v7x TCs
        vmem_limit_bytes=48 * 1024 * 1024,       # > working set; < v7x 64 MiB physical
    )

    if (not training) or dropout_p == 0.0:
        # Inference path: dropout is identity.
        out = pl.pallas_call(
            functools.partial(_pe_add_kernel, rep=rep),
            out_shape=out_struct,
            grid=grid,
            in_specs=[
                pl.BlockSpec(x_block(ts), idx),
                pl.BlockSpec(pe_block(ts), idx),
            ],
            out_specs=pl.BlockSpec(x_block(ts), idx),
            compiler_params=compiler_params,
        )(x_in, pe_in)
    else:
        if not (0.0 < dropout_p < 1.0):
            raise ValueError("training dropout requires 0 < p < 1")
        seed_arr = jnp.array([seed], dtype=jnp.int32)
        threshold = min(int(dropout_p * (1 << 32)), (1 << 32) - 1)
        scale = 1.0 / (1.0 - dropout_p)
        out = pl.pallas_call(
            functools.partial(_pe_add_dropout_kernel, rep=rep,
                              threshold=threshold, scale=scale),
            out_shape=out_struct,
            grid_spec=pltpu.PrefetchScalarGridSpec(
                num_scalar_prefetch=1,
                grid=grid,
                in_specs=[
                    pl.BlockSpec(x_block(ts), idx),
                    pl.BlockSpec(pe_block(ts), idx),
                ],
                out_specs=pl.BlockSpec(x_block(ts), idx),
            ),
            compiler_params=compiler_params,
        )(seed_arr, x_in, pe_in)

    if flatten:
        out = out.reshape(S, B, D)
    return out


# ---------------------------------------------------------------------------
# Demo / smoke test
# ---------------------------------------------------------------------------
if __name__ == "__main__":
    key = jax.random.PRNGKey(0)
    k1, k2 = jax.random.split(key)
    p = 0.1

    # --- Case 1: 3-D path (D and B*D not lane-aligned; small demo shape) ---
    d_model, seq_len, batch, max_len = 32, 8, 2, 64
    x = jax.random.normal(k1, (seq_len, batch, d_model), dtype=jnp.float32)
    pe = make_positional_encoding(d_model, max_len)

    out = positional_encoding_forward(x, pe, dropout_p=p, training=False)
    out = jax.block_until_ready(out)
    ref = x + pe[:seq_len]
    assert out.shape == (seq_len, batch, d_model)
    assert jnp.allclose(out, ref, atol=1e-6), "inference mismatch (3-D path)"

    out_tr = positional_encoding_forward(x, pe, dropout_p=p, training=True, seed=42)
    out_tr = jax.block_until_ready(out_tr)
    scaled = ref / (1.0 - p)
    ok = jnp.all(
        jnp.isclose(out_tr, 0.0, atol=1e-6)
        | jnp.isclose(out_tr, scaled, atol=1e-5, rtol=1e-5)
    )
    assert bool(ok), "training dropout produced unexpected values (3-D path)"

    # --- Case 2: lane-dense flatten path (B*D % 128 == 0, small batch) ---
    d_model2, seq_len2, batch2 = 128, 16, 2
    x2 = jax.random.normal(k2, (seq_len2, batch2, d_model2), dtype=jnp.float32)
    pe2 = make_positional_encoding(d_model2, max_len=32)

    out2 = positional_encoding_forward(x2, pe2, dropout_p=p, training=False)
    out2 = jax.block_until_ready(out2)
    ref2 = x2 + pe2[:seq_len2]
    assert jnp.allclose(out2, ref2, atol=1e-6), "inference mismatch (flatten path)"

    out2_tr = positional_encoding_forward(x2, pe2, dropout_p=p, training=True, seed=7)
    out2_tr = jax.block_until_ready(out2_tr)
    scaled2 = ref2 / (1.0 - p)
    ok2 = jnp.all(
        jnp.isclose(out2_tr, 0.0, atol=1e-6)
        | jnp.isclose(out2_tr, scaled2, atol=1e-5, rtol=1e-5)
    )
    assert bool(ok2), "training dropout produced unexpected values (flatten path)"

    print("KERNEL_OK")
</pallas_src>

<mosaic_0001>
module attributes {stable_mosaic.version = 11 : i64} {
  func.func @_pe_add_kernel(%arg0: i32, %arg1: memref<8x2x32xf32, #tpu.memory_space<vmem>>, %arg2: memref<8x1x32xf32, #tpu.memory_space<vmem>>, %arg3: memref<8x2x32xf32, #tpu.memory_space<vmem>>) attributes {dimension_semantics = [#tpu.dimension_semantics<parallel>], iteration_bounds = array<i64: 1>, scalar_prefetch = 0 : i64, scratch_operands = 0 : i64, tpu.core_type = #tpu.core_type<tc>, window_params = [{transform_indices = @transform_0, window_bounds = array<i64: 8, 2, 32>}, {transform_indices = @transform_1, window_bounds = array<i64: 8, 1, 32>}, {transform_indices = @transform_2, window_bounds = array<i64: 8, 2, 32>}]} {
    %c0 = arith.constant 0 : index
    %c0_0 = arith.constant 0 : index
    %c0_1 = arith.constant 0 : index
    %0 = vector.load %arg1[%c0, %c0_0, %c0_1] : memref<8x2x32xf32, #tpu.memory_space<vmem>>, vector<8x2x32xf32>
    %c0_2 = arith.constant 0 : index
    %c0_3 = arith.constant 0 : index
    %c0_4 = arith.constant 0 : index
    %1 = vector.load %arg2[%c0_2, %c0_3, %c0_4] : memref<8x1x32xf32, #tpu.memory_space<vmem>>, vector<8x1x32xf32>
    %2 = vector.broadcast %1 : vector<8x1x32xf32> to vector<8x2x32xf32>
    %3 = arith.addf %0, %2 : vector<8x2x32xf32>
    %c0_5 = arith.constant 0 : index
    %c0_6 = arith.constant 0 : index
    %c0_7 = arith.constant 0 : index
    %4 = vector.load %arg3[%c0_5, %c0_6, %c0_7] : memref<8x2x32xf32, #tpu.memory_space<vmem>>, vector<8x2x32xf32>
    tpu.vector_store %arg3[%c0_5, %c0_6, %c0_7], %3 {strides = array<i32>} : memref<8x2x32xf32, #tpu.memory_space<vmem>>, vector<8x2x32xf32>,
    return
  }
  func.func @transform_0(%arg0: i32) -> (i32, i32, i32) {
    %c0_i32 = arith.constant 0 : i32
    %c0_i32_0 = arith.constant 0 : i32
    %c0_i32_1 = arith.constant 0 : i32
    return %arg0, %c0_i32, %c0_i32_0 : i32, i32, i32
  }
  func.func @transform_1(%arg0: i32) -> (i32, i32, i32) {
    %c0_i32 = arith.constant 0 : i32
    %c0_i32_0 = arith.constant 0 : i32
    %c0_i32_1 = arith.constant 0 : i32
    return %arg0, %c0_i32, %c0_i32_0 : i32, i32, i32
  }
  func.func @transform_2(%arg0: i32) -> (i32, i32, i32) {
    %c0_i32 = arith.constant 0 : i32
    %c0_i32_0 = arith.constant 0 : i32
    %c0_i32_1 = arith.constant 0 : i32
    return %arg0, %c0_i32, %c0_i32_0 : i32, i32, i32
  }
}

</mosaic_0001>

<llo_original>
// kernel: tpu_custom_call.1
$region0: #{tpu_custom_call.1}
  #allocation0 [shape = 'u32[]', space=smem, size = 0x4, offset = 0x4, fixed_abs, tag = 'smem constant byte address 0x4 - core index']
  #allocation1 [shape = 'u32[144,128]{1,0:T(1,128)}', space=vmem, size = 0x12000, scoped, tag = 'internal scratch']
  %s0 = inlined_call_operand.hbm [shape: f32[8,2,32], index: 0, kind: input, shape index: {}]
  %s1 = inlined_call_operand.hbm [shape: f32[8,1,32], index: 1, kind: input, shape index: {}]
  %s2 = inlined_call_operand.hbm [shape: f32[8,2,32], index: 2, kind: output, shape index: {}]
  %s3 = sld [smem:[#allocation0]]
  $region26: #{tpu_custom_call.1} parent=0
    _
  %s5 = ssub.s32 1, %s3
  %s6 = scalar_select 0, %s5, %s3
  $region1: #{tpu_custom_call.1} parent=0
    #allocation2 [shape = 'u8[8192]{0}', space=vmem, size = 0x2000, scoped, tag = 'input window, operand 0, single buffered']
    #allocation3 [shape = 's32[1]{0}', space=sflag, size = 0x4, scoped, tag = 'scoped memory for tpu_custom_call.1']
    #allocation4 [shape = 's32[1]{0}', space=sflag, size = 0x4, scoped, tag = 'scoped memory for tpu_custom_call.1']
    #allocation5 [shape = 'u8[4096]{0}', space=vmem, size = 0x1000, scoped, tag = 'input window, operand 1, single buffered']
    #allocation6 [shape = 's32[1]{0}', space=sflag, size = 0x4, scoped, tag = 'scoped memory for tpu_custom_call.1']
    #allocation7 [shape = 'u8[8192]{0}', space=vmem, size = 0x2000, scoped, tag = 'output window, operand 0, single buffered']
    %7 = vsyncpa [#allocation3], 0
    %8 = vsyncpa [#allocation6], 0
    %9 = vsyncpa [#allocation4], 0
    // Predicated region
    $region2: #{tpu_custom_call.1} parent=1 // pred_check
      _
    $region3: #{tpu_custom_call.1} parent=1 // pred_check_branch
      %11 = sbr.rel (0) target = $region5
    $region4: #{tpu_custom_call.1} parent=1 // pred_region
      %s13 = ssub.s32 256, 256
      %14 = vsyncadd [#allocation3], %s13
      %s15 = sshll.u32 [#allocation2], 4
      %s16 = int_to_ptr.vmem [resolvable:$true] %s15
      %21 = dma.hbm_to_vmem [thread:$0]  %s0, 256, %s16, [#allocation3], 32, 32, 2
    $region5: #{tpu_custom_call.1} parent=1 // pred_fallthru
      _
    // Predicated region
    $region6: #{tpu_custom_call.1} parent=1 // pred_check
      _
    $region7: #{tpu_custom_call.1} parent=1 // pred_check_branch
      %23 = sbr.rel (0) target = $region9
    $region8: #{tpu_custom_call.1} parent=1 // pred_region
      %s25 = ssub.s32 128, 128
      %26 = vsyncadd [#allocation6], %s25
      %s27 = sshll.u32 [#allocation5], 4
      %s28 = int_to_ptr.vmem [resolvable:$true] %s27
      %33 = dma.hbm_to_vmem [thread:$0]  %s1, 128, %s28, [#allocation6], 16, 16, 1
    $region9: #{tpu_custom_call.1} parent=1 // pred_fallthru
      _
    // Predicated region
    $region10: #{tpu_custom_call.1} parent=1 // pred_check
      _
    $region11: #{tpu_custom_call.1} parent=1 // pred_check_branch
      %35 = sbr.rel (0) target = $region13
    $region12: #{tpu_custom_call.1} parent=1 // pred_region
      %36 = dma.done [#allocation3], 256
    $region13: #{tpu_custom_call.1} parent=1 // pred_fallthru
      _
    // Predicated region
    $region14: #{tpu_custom_call.1} parent=1 // pred_check
      _
    $region15: #{tpu_custom_call.1} parent=1 // pred_check_branch
      %38 = sbr.rel (0) target = $region17
    $region16: #{tpu_custom_call.1} parent=1 // pred_region
      %39 = dma.done [#allocation6], 128
    $region17: #{tpu_custom_call.1} parent=1 // pred_fallthru
      _
    %v40 = vld [vmem:[#allocation2] sm:$0x3]
    %v41 = vld [vmem:[#allocation2 + $0x2] sm:$0x3]
    %v42 = vld [vmem:[#allocation2 + $0x4] sm:$0x3]
    %v43 = vld [vmem:[#allocation2 + $0x6] sm:$0x3]
    %v44 = vld [vmem:[#allocation2 + $0x8] sm:$0x3]
    %v45 = vld [vmem:[#allocation2 + $0xa] sm:$0x3]
    %v46 = vld [vmem:[#allocation2 + $0xc] sm:$0x3]
    %v47 = vld [vmem:[#allocation2 + $0xe] sm:$0x3]
    %v48 = vld [vmem:[#allocation5] sm:$0x1]
    %v49 = vld [vmem:[#allocation5 + $0x1] sm:$0x1]
    %v50 = vld [vmem:[#allocation5 + $0x2] sm:$0x1]
    %v51 = vld [vmem:[#allocation5 + $0x3] sm:$0x1]
    %v52 = vld [vmem:[#allocation5 + $0x4] sm:$0x1]
    %v53 = vld [vmem:[#allocation5 + $0x5] sm:$0x1]
    %v54 = vld [vmem:[#allocation5 + $0x6] sm:$0x1]
    %v55 = vld [vmem:[#allocation5 + $0x7] sm:$0x1]
    %v64 = vlaneseq
    %v65 = vshrl.u32 %v64, 7
    %v66 = vsub.s32 0, %v65
    %v67 = vrot.slane %v48, %v66
    %v68 = vlaneseq
    %v69 = vshrl.u32 %v68, 7
    %v70 = vsub.s32 0, %v69
    %v71 = vrot.slane %v49, %v70
    %v72 = vlaneseq
    %v73 = vshrl.u32 %v72, 7
    %v74 = vsub.s32 0, %v73
    %v75 = vrot.slane %v50, %v74
    %v76 = vlaneseq
    %v77 = vshrl.u32 %v76, 7
    %v78 = vsub.s32 0, %v77
    %v79 = vrot.slane %v51, %v78
    %v80 = vlaneseq
    %v81 = vshrl.u32 %v80, 7
    %v82 = vsub.s32 0, %v81
    %v83 = vrot.slane %v52, %v82
    %v84 = vlaneseq
    %v85 = vshrl.u32 %v84, 7
    %v86 = vsub.s32 0, %v85
    %v87 = vrot.slane %v53, %v86
    %v88 = vlaneseq
    %v89 = vshrl.u32 %v88, 7
    %v90 = vsub.s32 0, %v89
    %v91 = vrot.slane %v54, %v90
    %v92 = vlaneseq
    %v93 = vshrl.u32 %v92, 7
    %v94 = vsub.s32 0, %v93
    %v95 = vrot.slane %v55, %v94
    %v104 = vadd.f32 %v40, %v67
    %v105 = vadd.f32 %v41, %v71
    %v106 = vadd.f32 %v42, %v75
    %v107 = vadd.f32 %v43, %v79
    %v108 = vadd.f32 %v44, %v83
    %v109 = vadd.f32 %v45, %v87
    %v110 = vadd.f32 %v46, %v91
    %v111 = vadd.f32 %v47, %v95
    %vm112 = vcmask 254976
    %113 = vst.msk [vmem:[#allocation7] sm:$0x3] %vm112, %v104
    %114 = vst.msk [vmem:[#allocation7 + $0x2] sm:$0x3] %vm112, %v105
    %115 = vst.msk [vmem:[#allocation7 + $0x4] sm:$0x3] %vm112, %v106
    %116 = vst.msk [vmem:[#allocation7 + $0x6] sm:$0x3] %vm112, %v107
    %117 = vst.msk [vmem:[#allocation7 + $0x8] sm:$0x3] %vm112, %v108
    %118 = vst.msk [vmem:[#allocation7 + $0xa] sm:$0x3] %vm112, %v109
    %119 = vst.msk [vmem:[#allocation7 + $0xc] sm:$0x3] %vm112, %v110
    %120 = vst.msk [vmem:[#allocation7 + $0xe] sm:$0x3] %vm112, %v111
    // Predicated region
    $region18: #{tpu_custom_call.1} parent=1 // pred_check
      _
    $region19: #{tpu_custom_call.1} parent=1 // pred_check_branch
      %122 = sbr.rel (0) target = $region21
    $region20: #{tpu_custom_call.1} parent=1 // pred_region
      %s124 = ssub.s32 256, 256
      %125 = vsyncadd [#allocation4], %s124
      %s126 = sshll.u32 [#allocation7], 4
      %s127 = int_to_ptr.vmem [resolvable:$true] %s126
      %132 = dma.vmem_to_hbm [thread:$0]  %s127, 256, %s2, [#allocation4], 32, 32, 2
    $region21: #{tpu_custom_call.1} parent=1 // pred_fallthru
      _
    // Predicated region
    $region22: #{tpu_custom_call.1} parent=1 // pred_check
      _
    $region23: #{tpu_custom_call.1} parent=1 // pred_check_branch
      %134 = sbr.rel (0) target = $region25
    $region24: #{tpu_custom_call.1} parent=1 // pred_region
      %135 = dma.done [#allocation4], 256
    $region25: #{tpu_custom_call.1} parent=1 // pred_fallthru
      _
    %136 = vsyncpa [#allocation3], 1
    %137 = vsyncpa [#allocation6], 1
    %138 = vsyncpa [#allocation4], 1

</llo_original>
